<compile_context>
chip_gen: v7x
topology: tpu7x:2x2x1
jax: 0.10.0
libtpu: 0.0.40
codegen_flags: <defaults>
</compile_context>

<pallas_src>
import jax
import jax.numpy as jnp
from jax import lax
from jax.experimental import pallas as pl
from jax.experimental.pallas import tpu as pltpu


def _round_up(n, m):
    return ((n + m - 1) // m) * m


def lstm_fused_kernel(x_ref, w_ih_t_ref, w_hh_t_ref, b_ref,
                      w_lin_t_ref, b_lin_ref, h0_ref, c0_ref,
                      y_ref, gx_scr, h_scr):
    """Whole LSTM + output Linear in one invocation (grid=()).

    Refs (full arrays, resident in VMEM):
      x_ref      : (T*Bp, I)  bf16   time-major, batch-padded input (row t*Bp+b)
      w_ih_t_ref : (I, Gp)    bf16   input->hidden weights, packed gate layout
      w_hh_t_ref : (H, Gp)    bf16   hidden->hidden weights, packed gate layout
      b_ref      : (1, Gp)    f32    b_ih + b_hh
      w_lin_t_ref: (H, Op)    bf16   output-linear weights (lane-padded)
      b_lin_ref  : (1, Op)    f32
      h0_ref     : (Bp, H)    f32    initial hidden state (batch-padded)
      c0_ref     : (Bp, H)    f32    initial cell state   (batch-padded)
      y_ref      : (T*Bp, Op) f32    output (lane-dense 128-wide store)
    Scratch (VMEM):
      gx_scr     : (T*Bp, Gp) f32    x @ W_ih^T + b, all timesteps
      h_scr      : (T*Bp, H)  f32    hidden state for every timestep
    """
    TB = x_ref.shape[0]
    Bp, H = h0_ref.shape
    Gp = b_ref.shape[1]
    T = TB // Bp
    bf16 = jnp.bfloat16

    # ---- pre-phase: one batched MXU call (bf16 operands, f32 accumulate) -----
    gx_scr[...] = (jnp.dot(x_ref[...], w_ih_t_ref[...],
                           preferred_element_type=jnp.float32)
                   + b_ref[...])

    # Hoisted out of the recurrence: the (tiny) recurrent weight tile and the
    # lane mask picking the tanh (g) gate inside the packed gate block.
    w_hh = w_hh_t_ref[...]                                        # (H, Gp) bf16
    col = lax.broadcasted_iota(jnp.int32, (Bp, Gp), 1)
    g_lanes = jnp.logical_and(col >= 2 * H, col < 3 * H)          # i,f,g,o order

    def _sigmoid(v):
        # exp + approx reciprocal: both on the EUP slot, no VPU divide.
        return pl.reciprocal(1.0 + jnp.exp(-v), approx=True)

    # ---- serial recurrence: only h_prev @ W_hh^T is on the critical path -----
    def step(t, carry):
        h_prev_bf, c_prev = carry
        row = pl.multiple_of(t * Bp, Bp)                  # sublane-aligned rows
        gates = gx_scr[pl.ds(row, Bp), :] + jnp.dot(
            h_prev_bf, w_hh, preferred_element_type=jnp.float32)
        # One whole-vreg sigmoid + one whole-vreg tanh over the packed block,
        # g-gate lanes selected with a cheap VPU vsel.
        act = jnp.where(g_lanes, jnp.tanh(gates), _sigmoid(gates))
        i_g = act[:, 0 * H:1 * H]
        f_g = act[:, 1 * H:2 * H]
        g_g = act[:, 2 * H:3 * H]
        o_g = act[:, 3 * H:4 * H]
        c_new = f_g * c_prev + i_g * g_g                  # f32 elementwise
        h_new = o_g * jnp.tanh(c_new)
        h_scr[pl.ds(row, Bp), :] = h_new
        return (h_new.astype(bf16), c_new)

    lax.fori_loop(0, T, step,
                  (h0_ref[...].astype(bf16), c0_ref[...]), unroll=True)

    # ---- final phase: one batched Linear + a single lane-dense store ---------
    y = (jnp.dot(h_scr[...].astype(bf16), w_lin_t_ref[...],
                 preferred_element_type=jnp.float32)
         + b_lin_ref[...])
    y_ref[...] = y.astype(y_ref.dtype)


def lstm_encoding_action(x, params, h0, c0):
    """x: (B, T, I) float32; returns (B, T, O) float32."""
    B, T, I = x.shape
    H = params["w_hh"].shape[1]
    O = params["w_lin"].shape[0]

    LANE, SUBLANE = 128, 8
    G = 4 * H
    Gp = _round_up(G, LANE)       # packed gate block (== 128 for H == 32)
    Op = _round_up(O, LANE)       # lane-dense output store
    Bp = _round_up(B, SUBLANE)    # sublane-aligned batch

    f32, bf16 = jnp.float32, jnp.bfloat16

    # --- packed-gate weights (PyTorch gate order i, f, g, o preserved) --------
    def pad_gate_cols(w_t):                      # (rows, 4H) -> (rows, Gp)
        rows = w_t.shape[0]
        return jnp.zeros((rows, Gp), f32).at[:, :G].set(w_t.astype(f32))

    w_ih_t = pad_gate_cols(params["w_ih"].T).astype(bf16)                  # (I, Gp)
    w_hh_t = pad_gate_cols(params["w_hh"].T).astype(bf16)                  # (H, Gp)
    b = pad_gate_cols((params["b_ih"] + params["b_hh"]).reshape(1, G))     # (1, Gp)
    w_lin_t = (jnp.zeros((H, Op), f32).at[:, :O]
               .set(params["w_lin"].T.astype(f32)).astype(bf16))           # (H, Op)
    b_lin = jnp.zeros((1, Op), f32).at[0, :O].set(params["b_lin"].astype(f32))

    # --- sublane-pad batch, go time-major, flatten (T, Bp) -> rows ------------
    # TODO(synk): if a T-chunk grid axis is ever added (large T*Bp), do this
    # transpose/pad via BlockSpec index_map instead of a wrapper-side XLA copy.
    x_p = jnp.zeros((T, Bp, I), f32).at[:, :B, :].set(jnp.swapaxes(x, 0, 1))
    x_p = x_p.reshape(T * Bp, I).astype(bf16)
    h0_p = jnp.zeros((Bp, H), f32).at[:B, :].set(h0.astype(f32))
    c0_p = jnp.zeros((Bp, H), f32).at[:B, :].set(c0.astype(f32))

    flops = (2 * T * Bp * I * Gp          # input projection
             + 2 * T * Bp * H * Gp        # recurrence
             + 2 * T * Bp * H * Op)       # output linear
    transcendentals = T * Bp * (2 * Gp + H)     # exp+tanh on gates, tanh(c)
    bytes_accessed = (2 * (x_p.size + w_ih_t.size + w_hh_t.size + w_lin_t.size)
                      + 4 * (b.size + b_lin.size + h0_p.size + c0_p.size
                             + T * Bp * Op))

    vmem_spec = pl.BlockSpec(memory_space=pltpu.MemorySpace.VMEM)

    y_p = pl.pallas_call(
        lstm_fused_kernel,
        out_shape=jax.ShapeDtypeStruct((T * Bp, Op), f32),
        in_specs=[vmem_spec] * 8,
        out_specs=vmem_spec,
        scratch_shapes=[
            pltpu.VMEM((T * Bp, Gp), f32),   # x @ W_ih^T + b (all timesteps)
            pltpu.VMEM((T * Bp, H), f32),    # hidden states (all timesteps)
        ],
        compiler_params=pltpu.CompilerParams(
            vmem_limit_bytes=32 * 1024 * 1024),
        cost_estimate=pl.CostEstimate(flops=flops,
                                      transcendentals=transcendentals,
                                      bytes_accessed=bytes_accessed),
    )(x_p, w_ih_t, w_hh_t, b, w_lin_t, b_lin, h0_p, c0_p)

    # TODO(synk): on v7x with Bp >= 16, add a leading "parallel" batch grid axis
    # so the second TensorCore runs an independent batch slice of the recurrence.
    y = y_p.reshape(T, Bp, Op)
    return jnp.swapaxes(y, 0, 1)[:B, :, :O]


def reference_lstm(x, params, h0, c0):
    """Pure-JAX f32 reference matching torch.nn.LSTM(batch_first=True) + Linear."""
    H = params["w_hh"].shape[1]

    def step(carry, x_t):
        h, c = carry
        gates = (x_t @ params["w_ih"].T + params["b_ih"]
                 + h @ params["w_hh"].T + params["b_hh"])
        i = jax.nn.sigmoid(gates[:, 0:H])
        f = jax.nn.sigmoid(gates[:, H:2 * H])
        g = jnp.tanh(gates[:, 2 * H:3 * H])
        o = jax.nn.sigmoid(gates[:, 3 * H:4 * H])
        c_new = f * c + i * g
        h_new = o * jnp.tanh(c_new)
        return (h_new, c_new), h_new

    xs = jnp.swapaxes(x, 0, 1)                         # (T, B, I)
    (_, _), hs = jax.lax.scan(step, (h0, c0), xs)      # (T, B, H)
    hs = jnp.swapaxes(hs, 0, 1)                        # (B, T, H)
    return hs @ params["w_lin"].T + params["b_lin"]    # (B, T, O)


if __name__ == "__main__":
    # input = [batch_size, num_predicate, seq_length]
    batch_size = 2
    num_predicate = 8      # LSTM time axis (batch_first=True)
    seq_length = 16        # == input_size of the LSTM
    hidden_size = 32
    output_size = 8

    key = jax.random.PRNGKey(0)
    kx, kwi, kwh, kbi, kbh, kwl, kbl, kh0, kc0 = jax.random.split(key, 9)

    bound = 1.0 / jnp.sqrt(jnp.float32(hidden_size))
    params = {
        "w_ih": jax.random.uniform(kwi, (4 * hidden_size, seq_length),
                                   jnp.float32, -bound, bound),
        "w_hh": jax.random.uniform(kwh, (4 * hidden_size, hidden_size),
                                   jnp.float32, -bound, bound),
        "b_ih": jax.random.uniform(kbi, (4 * hidden_size,),
                                   jnp.float32, -bound, bound),
        "b_hh": jax.random.uniform(kbh, (4 * hidden_size,),
                                   jnp.float32, -bound, bound),
        "w_lin": jax.random.uniform(kwl, (output_size, hidden_size),
                                    jnp.float32, -bound, bound),
        "b_lin": jax.random.uniform(kbl, (output_size,),
                                    jnp.float32, -bound, bound),
    }

    x = jax.random.normal(kx, (batch_size, num_predicate, seq_length), jnp.float32)
    # The PyTorch forward draws h_0/c_0 from randn each call; reproduced
    # deterministically here as explicit inputs.
    h0 = jax.random.normal(kh0, (batch_size, hidden_size), jnp.float32)
    c0 = jax.random.normal(kc0, (batch_size, hidden_size), jnp.float32)

    out = lstm_encoding_action(x, params, h0, c0)
    out = jax.block_until_ready(out)

    ref = reference_lstm(x, params, h0, c0)
    assert out.shape == (batch_size, num_predicate, output_size)
    # Tolerance relaxed vs the f32 reference: MXU operands are bf16 and sigmoid
    # uses the approx EUP reciprocal (per perf review); typical error ~1e-2.
    assert jnp.allclose(out, ref, atol=5e-2, rtol=5e-2), "mismatch vs reference"

    print("KERNEL_OK")
</pallas_src>

<mosaic_0001>
module attributes {stable_mosaic.version = 11 : i64} {
  func.func @lstm_fused_kernel(%arg0: memref<64x16xbf16, #tpu.memory_space<vmem>>, %arg1: memref<16x128xbf16, #tpu.memory_space<vmem>>, %arg2: memref<32x128xbf16, #tpu.memory_space<vmem>>, %arg3: memref<1x128xf32, #tpu.memory_space<vmem>>, %arg4: memref<32x128xbf16, #tpu.memory_space<vmem>>, %arg5: memref<1x128xf32, #tpu.memory_space<vmem>>, %arg6: memref<8x32xf32, #tpu.memory_space<vmem>>, %arg7: memref<8x32xf32, #tpu.memory_space<vmem>>, %arg8: memref<64x128xf32, #tpu.memory_space<vmem>>, %arg9: memref<64x128xf32, #tpu.memory_space<vmem>>, %arg10: memref<64x32xf32, #tpu.memory_space<vmem>>) attributes {dimension_semantics = [], scalar_prefetch = 0 : i64, scratch_operands = 2 : i64, tpu.core_type = #tpu.core_type<tc>} {
    %c0 = arith.constant 0 : index
    %c0_0 = arith.constant 0 : index
    %0 = vector.load %arg0[%c0, %c0_0] : memref<64x16xbf16, #tpu.memory_space<vmem>>, vector<64x16xbf16>
    %c0_1 = arith.constant 0 : index
    %c0_2 = arith.constant 0 : index
    %1 = vector.load %arg1[%c0_1, %c0_2] : memref<16x128xbf16, #tpu.memory_space<vmem>>, vector<16x128xbf16>
    %cst = arith.constant dense<0.000000e+00> : vector<64x128xf32>
    %2 = tpu.matmul %0, %1, %cst {dimension_numbers = #tpu.dot_dimension_numbers<[1], [0], [0], [1], [0, 0, 1, 1], [], []>} : vector<64x16xbf16>, vector<16x128xbf16>, vector<64x128xf32> -> vector<64x128xf32>
    %c0_3 = arith.constant 0 : index
    %c0_4 = arith.constant 0 : index
    %3 = vector.load %arg3[%c0_3, %c0_4] : memref<1x128xf32, #tpu.memory_space<vmem>>, vector<1x128xf32>
    %4 = vector.broadcast %3 : vector<1x128xf32> to vector<64x128xf32>
    %5 = arith.addf %2, %4 : vector<64x128xf32>
    %c0_5 = arith.constant 0 : index
    %c0_6 = arith.constant 0 : index
    %6 = vector.load %arg9[%c0_5, %c0_6] : memref<64x128xf32, #tpu.memory_space<vmem>>, vector<64x128xf32>
    tpu.vector_store %arg9[%c0_5, %c0_6], %5 {strides = array<i32>} : memref<64x128xf32, #tpu.memory_space<vmem>>, vector<64x128xf32>,
    %c0_7 = arith.constant 0 : index
    %c0_8 = arith.constant 0 : index
    %7 = vector.load %arg2[%c0_7, %c0_8] : memref<32x128xbf16, #tpu.memory_space<vmem>>, vector<32x128xbf16>
    %8 = tpu.iota {dimensions = array<i32: 1>} : vector<8x128xi32>
    %c64_i32 = arith.constant 64 : i32
    %9 = vector.broadcast %c64_i32 : i32 to vector<8x128xi32>
    %10 = arith.cmpi sge, %8, %9 : vector<8x128xi32>
    %c96_i32 = arith.constant 96 : i32
    %11 = vector.broadcast %c96_i32 : i32 to vector<8x128xi32>
    %12 = arith.cmpi slt, %8, %11 : vector<8x128xi32>
    %13 = arith.andi %10, %12 : vector<8x128xi1>
    %c0_9 = arith.constant 0 : index
    %c0_10 = arith.constant 0 : index
    %14 = vector.load %arg6[%c0_9, %c0_10] : memref<8x32xf32, #tpu.memory_space<vmem>>, vector<8x32xf32>
    %15 = arith.truncf %14 : vector<8x32xf32> to vector<8x32xbf16>
    %c0_11 = arith.constant 0 : index
    %c0_12 = arith.constant 0 : index
    %16 = vector.load %arg7[%c0_11, %c0_12] : memref<8x32xf32, #tpu.memory_space<vmem>>, vector<8x32xf32>
    %c0_i32 = arith.constant 0 : i32
    %c8_i32 = arith.constant 8 : i32
    %17 = arith.muli %c0_i32, %c8_i32 : i32
    %18 = tpu.assume_multiple %17, 8 : i32
    %19 = arith.index_cast %18 : i32 to index
    %c0_13 = arith.constant 0 : index
    %20 = vector.load %arg9[%19, %c0_13] : memref<64x128xf32, #tpu.memory_space<vmem>>, vector<8x128xf32>
    %cst_14 = arith.constant dense<0.000000e+00> : vector<8x128xf32>
    %21 = tpu.matmul %15, %7, %cst_14 {dimension_numbers = #tpu.dot_dimension_numbers<[1], [0], [0], [1], [0, 0, 1, 1], [], []>} : vector<8x32xbf16>, vector<32x128xbf16>, vector<8x128xf32> -> vector<8x128xf32>
    %22 = arith.addf %20, %21 : vector<8x128xf32>
    %23 = math.tanh %22 : vector<8x128xf32>
    %cst_15 = arith.constant 0.000000e+00 : f32
    %24 = vector.broadcast %cst_15 : f32 to vector<8x128xf32>
    %25 = arith.subf %24, %22 : vector<8x128xf32>
    %26 = math.exp %25 : vector<8x128xf32>
    %cst_16 = arith.constant 1.000000e+00 : f32
    %27 = vector.broadcast %cst_16 : f32 to vector<8x128xf32>
    %28 = arith.addf %27, %26 : vector<8x128xf32>
    %29 = tpu.reciprocal %28 {approx = true} : vector<8x128xf32> -> vector<8x128xf32>
    %30 = arith.select %13, %23, %29 : vector<8x128xi1>, vector<8x128xf32>
    %31 = vector.extract_strided_slice %30 {offsets = [0, 0], sizes = [8, 32], strides = [1, 1]} : vector<8x128xf32> to vector<8x32xf32>
    %32 = vector.extract_strided_slice %30 {offsets = [0, 32], sizes = [8, 32], strides = [1, 1]} : vector<8x128xf32> to vector<8x32xf32>
    %33 = vector.extract_strided_slice %30 {offsets = [0, 64], sizes = [8, 32], strides = [1, 1]} : vector<8x128xf32> to vector<8x32xf32>
    %34 = vector.extract_strided_slice %30 {offsets = [0, 96], sizes = [8, 32], strides = [1, 1]} : vector<8x128xf32> to vector<8x32xf32>
    %35 = arith.mulf %32, %16 : vector<8x32xf32>
    %36 = arith.mulf %31, %33 : vector<8x32xf32>
    %37 = arith.addf %35, %36 : vector<8x32xf32>
    %38 = math.tanh %37 : vector<8x32xf32>
    %39 = arith.mulf %34, %38 : vector<8x32xf32>
    %40 = arith.index_cast %18 : i32 to index
    %c0_17 = arith.constant 0 : index
    %41 = vector.load %arg10[%40, %c0_17] : memref<64x32xf32, #tpu.memory_space<vmem>>, vector<8x32xf32>
    tpu.vector_store %arg10[%40, %c0_17], %39 {strides = array<i32>} : memref<64x32xf32, #tpu.memory_space<vmem>>, vector<8x32xf32>,
    %42 = arith.truncf %39 : vector<8x32xf32> to vector<8x32xbf16>
    %c1_i32 = arith.constant 1 : i32
    %c8_i32_18 = arith.constant 8 : i32
    %43 = arith.muli %c1_i32, %c8_i32_18 : i32
    %44 = tpu.assume_multiple %43, 8 : i32
    %45 = arith.index_cast %44 : i32 to index
    %c0_19 = arith.constant 0 : index
    %46 = vector.load %arg9[%45, %c0_19] : memref<64x128xf32, #tpu.memory_space<vmem>>, vector<8x128xf32>
    %cst_20 = arith.constant dense<0.000000e+00> : vector<8x128xf32>
    %47 = tpu.matmul %42, %7, %cst_20 {dimension_numbers = #tpu.dot_dimension_numbers<[1], [0], [0], [1], [0, 0, 1, 1], [], []>} : vector<8x32xbf16>, vector<32x128xbf16>, vector<8x128xf32> -> vector<8x128xf32>
    %48 = arith.addf %46, %47 : vector<8x128xf32>
    %49 = math.tanh %48 : vector<8x128xf32>
    %cst_21 = arith.constant 0.000000e+00 : f32
    %50 = vector.broadcast %cst_21 : f32 to vector<8x128xf32>
    %51 = arith.subf %50, %48 : vector<8x128xf32>
    %52 = math.exp %51 : vector<8x128xf32>
    %cst_22 = arith.constant 1.000000e+00 : f32
    %53 = vector.broadcast %cst_22 : f32 to vector<8x128xf32>
    %54 = arith.addf %53, %52 : vector<8x128xf32>
    %55 = tpu.reciprocal %54 {approx = true} : vector<8x128xf32> -> vector<8x128xf32>
    %56 = arith.select %13, %49, %55 : vector<8x128xi1>, vector<8x128xf32>
    %57 = vector.extract_strided_slice %56 {offsets = [0, 0], sizes = [8, 32], strides = [1, 1]} : vector<8x128xf32> to vector<8x32xf32>
    %58 = vector.extract_strided_slice %56 {offsets = [0, 32], sizes = [8, 32], strides = [1, 1]} : vector<8x128xf32> to vector<8x32xf32>
    %59 = vector.extract_strided_slice %56 {offsets = [0, 64], sizes = [8, 32], strides = [1, 1]} : vector<8x128xf32> to vector<8x32xf32>
    %60 = vector.extract_strided_slice %56 {offsets = [0, 96], sizes = [8, 32], strides = [1, 1]} : vector<8x128xf32> to vector<8x32xf32>
    %61 = arith.mulf %58, %37 : vector<8x32xf32>
    %62 = arith.mulf %57, %59 : vector<8x32xf32>
    %63 = arith.addf %61, %62 : vector<8x32xf32>
    %64 = math.tanh %63 : vector<8x32xf32>
    %65 = arith.mulf %60, %64 : vector<8x32xf32>
    %66 = arith.index_cast %44 : i32 to index
    %c0_23 = arith.constant 0 : index
    %67 = vector.load %arg10[%66, %c0_23] : memref<64x32xf32, #tpu.memory_space<vmem>>, vector<8x32xf32>
    tpu.vector_store %arg10[%66, %c0_23], %65 {strides = array<i32>} : memref<64x32xf32, #tpu.memory_space<vmem>>, vector<8x32xf32>,
    %68 = arith.truncf %65 : vector<8x32xf32> to vector<8x32xbf16>
    %c2_i32 = arith.constant 2 : i32
    %c8_i32_24 = arith.constant 8 : i32
    %69 = arith.muli %c2_i32, %c8_i32_24 : i32
    %70 = tpu.assume_multiple %69, 8 : i32
    %71 = arith.index_cast %70 : i32 to index
    %c0_25 = arith.constant 0 : index
    %72 = vector.load %arg9[%71, %c0_25] : memref<64x128xf32, #tpu.memory_space<vmem>>, vector<8x128xf32>
    %cst_26 = arith.constant dense<0.000000e+00> : vector<8x128xf32>
    %73 = tpu.matmul %68, %7, %cst_26 {dimension_numbers = #tpu.dot_dimension_numbers<[1], [0], [0], [1], [0, 0, 1, 1], [], []>} : vector<8x32xbf16>, vector<32x128xbf16>, vector<8x128xf32> -> vector<8x128xf32>
    %74 = arith.addf %72, %73 : vector<8x128xf32>
    %75 = math.tanh %74 : vector<8x128xf32>
    %cst_27 = arith.constant 0.000000e+00 : f32
    %76 = vector.broadcast %cst_27 : f32 to vector<8x128xf32>
    %77 = arith.subf %76, %74 : vector<8x128xf32>
    %78 = math.exp %77 : vector<8x128xf32>
    %cst_28 = arith.constant 1.000000e+00 : f32
    %79 = vector.broadcast %cst_28 : f32 to vector<8x128xf32>
    %80 = arith.addf %79, %78 : vector<8x128xf32>
    %81 = tpu.reciprocal %80 {approx = true} : vector<8x128xf32> -> vector<8x128xf32>
    %82 = arith.select %13, %75, %81 : vector<8x128xi1>, vector<8x128xf32>
    %83 = vector.extract_strided_slice %82 {offsets = [0, 0], sizes = [8, 32], strides = [1, 1]} : vector<8x128xf32> to vector<8x32xf32>
    %84 = vector.extract_strided_slice %82 {offsets = [0, 32], sizes = [8, 32], strides = [1, 1]} : vector<8x128xf32> to vector<8x32xf32>
    %85 = vector.extract_strided_slice %82 {offsets = [0, 64], sizes = [8, 32], strides = [1, 1]} : vector<8x128xf32> to vector<8x32xf32>
    %86 = vector.extract_strided_slice %82 {offsets = [0, 96], sizes = [8, 32], strides = [1, 1]} : vector<8x128xf32> to vector<8x32xf32>
    %87 = arith.mulf %84, %63 : vector<8x32xf32>
    %88 = arith.mulf %83, %85 : vector<8x32xf32>
    %89 = arith.addf %87, %88 : vector<8x32xf32>
    %90 = math.tanh %89 : vector<8x32xf32>
    %91 = arith.mulf %86, %90 : vector<8x32xf32>
    %92 = arith.index_cast %70 : i32 to index
    %c0_29 = arith.constant 0 : index
    %93 = vector.load %arg10[%92, %c0_29] : memref<64x32xf32, #tpu.memory_space<vmem>>, vector<8x32xf32>
    tpu.vector_store %arg10[%92, %c0_29], %91 {strides = array<i32>} : memref<64x32xf32, #tpu.memory_space<vmem>>, vector<8x32xf32>,
    %94 = arith.truncf %91 : vector<8x32xf32> to vector<8x32xbf16>
    %c3_i32 = arith.constant 3 : i32
    %c8_i32_30 = arith.constant 8 : i32
    %95 = arith.muli %c3_i32, %c8_i32_30 : i32
    %96 = tpu.assume_multiple %95, 8 : i32
    %97 = arith.index_cast %96 : i32 to index
    %c0_31 = arith.constant 0 : index
    %98 = vector.load %arg9[%97, %c0_31] : memref<64x128xf32, #tpu.memory_space<vmem>>, vector<8x128xf32>
    %cst_32 = arith.constant dense<0.000000e+00> : vector<8x128xf32>
    %99 = tpu.matmul %94, %7, %cst_32 {dimension_numbers = #tpu.dot_dimension_numbers<[1], [0], [0], [1], [0, 0, 1, 1], [], []>} : vector<8x32xbf16>, vector<32x128xbf16>, vector<8x128xf32> -> vector<8x128xf32>
    %100 = arith.addf %98, %99 : vector<8x128xf32>
    %101 = math.tanh %100 : vector<8x128xf32>
    %cst_33 = arith.constant 0.000000e+00 : f32
    %102 = vector.broadcast %cst_33 : f32 to vector<8x128xf32>
    %103 = arith.subf %102, %100 : vector<8x128xf32>
    %104 = math.exp %103 : vector<8x128xf32>
    %cst_34 = arith.constant 1.000000e+00 : f32
    %105 = vector.broadcast %cst_34 : f32 to vector<8x128xf32>
    %106 = arith.addf %105, %104 : vector<8x128xf32>
    %107 = tpu.reciprocal %106 {approx = true} : vector<8x128xf32> -> vector<8x128xf32>
    %108 = arith.select %13, %101, %107 : vector<8x128xi1>, vector<8x128xf32>
    %109 = vector.extract_strided_slice %108 {offsets = [0, 0], sizes = [8, 32], strides = [1, 1]} : vector<8x128xf32> to vector<8x32xf32>
    %110 = vector.extract_strided_slice %108 {offsets = [0, 32], sizes = [8, 32], strides = [1, 1]} : vector<8x128xf32> to vector<8x32xf32>
    %111 = vector.extract_strided_slice %108 {offsets = [0, 64], sizes = [8, 32], strides = [1, 1]} : vector<8x128xf32> to vector<8x32xf32>
    %112 = vector.extract_strided_slice %108 {offsets = [0, 96], sizes = [8, 32], strides = [1, 1]} : vector<8x128xf32> to vector<8x32xf32>
    %113 = arith.mulf %110, %89 : vector<8x32xf32>
    %114 = arith.mulf %109, %111 : vector<8x32xf32>
    %115 = arith.addf %113, %114 : vector<8x32xf32>
    %116 = math.tanh %115 : vector<8x32xf32>
    %117 = arith.mulf %112, %116 : vector<8x32xf32>
    %118 = arith.index_cast %96 : i32 to index
    %c0_35 = arith.constant 0 : index
    %119 = vector.load %arg10[%118, %c0_35] : memref<64x32xf32, #tpu.memory_space<vmem>>, vector<8x32xf32>
    tpu.vector_store %arg10[%118, %c0_35], %117 {strides = array<i32>} : memref<64x32xf32, #tpu.memory_space<vmem>>, vector<8x32xf32>,
    %120 = arith.truncf %117 : vector<8x32xf32> to vector<8x32xbf16>
    %c4_i32 = arith.constant 4 : i32
    %c8_i32_36 = arith.constant 8 : i32
    %121 = arith.muli %c4_i32, %c8_i32_36 : i32
    %122 = tpu.assume_multiple %121, 8 : i32
    %123 = arith.index_cast %122 : i32 to index
    %c0_37 = arith.constant 0 : index
    %124 = vector.load %arg9[%123, %c0_37] : memref<64x128xf32, #tpu.memory_space<vmem>>, vector<8x128xf32>
    %cst_38 = arith.constant dense<0.000000e+00> : vector<8x128xf32>
    %125 = tpu.matmul %120, %7, %cst_38 {dimension_numbers = #tpu.dot_dimension_numbers<[1], [0], [0], [1], [0, 0, 1, 1], [], []>} : vector<8x32xbf16>, vector<32x128xbf16>, vector<8x128xf32> -> vector<8x128xf32>
    %126 = arith.addf %124, %125 : vector<8x128xf32>
    %127 = math.tanh %126 : vector<8x128xf32>
    %cst_39 = arith.constant 0.000000e+00 : f32
    %128 = vector.broadcast %cst_39 : f32 to vector<8x128xf32>
    %129 = arith.subf %128, %126 : vector<8x128xf32>
    %130 = math.exp %129 : vector<8x128xf32>
    %cst_40 = arith.constant 1.000000e+00 : f32
    %131 = vector.broadcast %cst_40 : f32 to vector<8x128xf32>
    %132 = arith.addf %131, %130 : vector<8x128xf32>
    %133 = tpu.reciprocal %132 {approx = true} : vector<8x128xf32> -> vector<8x128xf32>
    %134 = arith.select %13, %127, %133 : vector<8x128xi1>, vector<8x128xf32>
    %135 = vector.extract_strided_slice %134 {offsets = [0, 0], sizes = [8, 32], strides = [1, 1]} : vector<8x128xf32> to vector<8x32xf32>
    %136 = vector.extract_strided_slice %134 {offsets = [0, 32], sizes = [8, 32], strides = [1, 1]} : vector<8x128xf32> to vector<8x32xf32>
    %137 = vector.extract_strided_slice %134 {offsets = [0, 64], sizes = [8, 32], strides = [1, 1]} : vector<8x128xf32> to vector<8x32xf32>
    %138 = vector.extract_strided_slice %134 {offsets = [0, 96], sizes = [8, 32], strides = [1, 1]} : vector<8x128xf32> to vector<8x32xf32>
    %139 = arith.mulf %136, %115 : vector<8x32xf32>
    %140 = arith.mulf %135, %137 : vector<8x32xf32>
    %141 = arith.addf %139, %140 : vector<8x32xf32>
    %142 = math.tanh %141 : vector<8x32xf32>
    %143 = arith.mulf %138, %142 : vector<8x32xf32>
    %144 = arith.index_cast %122 : i32 to index
    %c0_41 = arith.constant 0 : index
    %145 = vector.load %arg10[%144, %c0_41] : memref<64x32xf32, #tpu.memory_space<vmem>>, vector<8x32xf32>
    tpu.vector_store %arg10[%144, %c0_41], %143 {strides = array<i32>} : memref<64x32xf32, #tpu.memory_space<vmem>>, vector<8x32xf32>,
    %146 = arith.truncf %143 : vector<8x32xf32> to vector<8x32xbf16>
    %c5_i32 = arith.constant 5 : i32
    %c8_i32_42 = arith.constant 8 : i32
    %147 = arith.muli %c5_i32, %c8_i32_42 : i32
    %148 = tpu.assume_multiple %147, 8 : i32
    %149 = arith.index_cast %148 : i32 to index
    %c0_43 = arith.constant 0 : index
    %150 = vector.load %arg9[%149, %c0_43] : memref<64x128xf32, #tpu.memory_space<vmem>>, vector<8x128xf32>
    %cst_44 = arith.constant dense<0.000000e+00> : vector<8x128xf32>
    %151 = tpu.matmul %146, %7, %cst_44 {dimension_numbers = #tpu.dot_dimension_numbers<[1], [0], [0], [1], [0, 0, 1, 1], [], []>} : vector<8x32xbf16>, vector<32x128xbf16>, vector<8x128xf32> -> vector<8x128xf32>
    %152 = arith.addf %150, %151 : vector<8x128xf32>
    %153 = math.tanh %152 : vector<8x128xf32>
    %cst_45 = arith.constant 0.000000e+00 : f32
    %154 = vector.broadcast %cst_45 : f32 to vector<8x128xf32>
    %155 = arith.subf %154, %152 : vector<8x128xf32>
    %156 = math.exp %155 : vector<8x128xf32>
    %cst_46 = arith.constant 1.000000e+00 : f32
    %157 = vector.broadcast %cst_46 : f32 to vector<8x128xf32>
    %158 = arith.addf %157, %156 : vector<8x128xf32>
    %159 = tpu.reciprocal %158 {approx = true} : vector<8x128xf32> -> vector<8x128xf32>
    %160 = arith.select %13, %153, %159 : vector<8x128xi1>, vector<8x128xf32>
    %161 = vector.extract_strided_slice %160 {offsets = [0, 0], sizes = [8, 32], strides = [1, 1]} : vector<8x128xf32> to vector<8x32xf32>
    %162 = vector.extract_strided_slice %160 {offsets = [0, 32], sizes = [8, 32], strides = [1, 1]} : vector<8x128xf32> to vector<8x32xf32>
    %163 = vector.extract_strided_slice %160 {offsets = [0, 64], sizes = [8, 32], strides = [1, 1]} : vector<8x128xf32> to vector<8x32xf32>
    %164 = vector.extract_strided_slice %160 {offsets = [0, 96], sizes = [8, 32], strides = [1, 1]} : vector<8x128xf32> to vector<8x32xf32>
    %165 = arith.mulf %162, %141 : vector<8x32xf32>
    %166 = arith.mulf %161, %163 : vector<8x32xf32>
    %167 = arith.addf %165, %166 : vector<8x32xf32>
    %168 = math.tanh %167 : vector<8x32xf32>
    %169 = arith.mulf %164, %168 : vector<8x32xf32>
    %170 = arith.index_cast %148 : i32 to index
    %c0_47 = arith.constant 0 : index
    %171 = vector.load %arg10[%170, %c0_47] : memref<64x32xf32, #tpu.memory_space<vmem>>, vector<8x32xf32>
    tpu.vector_store %arg10[%170, %c0_47], %169 {strides = array<i32>} : memref<64x32xf32, #tpu.memory_space<vmem>>, vector<8x32xf32>,
    %172 = arith.truncf %169 : vector<8x32xf32> to vector<8x32xbf16>
    %c6_i32 = arith.constant 6 : i32
    %c8_i32_48 = arith.constant 8 : i32
    %173 = arith.muli %c6_i32, %c8_i32_48 : i32
    %174 = tpu.assume_multiple %173, 8 : i32
    %175 = arith.index_cast %174 : i32 to index
    %c0_49 = arith.constant 0 : index
    %176 = vector.load %arg9[%175, %c0_49] : memref<64x128xf32, #tpu.memory_space<vmem>>, vector<8x128xf32>
    %cst_50 = arith.constant dense<0.000000e+00> : vector<8x128xf32>
    %177 = tpu.matmul %172, %7, %cst_50 {dimension_numbers = #tpu.dot_dimension_numbers<[1], [0], [0], [1], [0, 0, 1, 1], [], []>} : vector<8x32xbf16>, vector<32x128xbf16>, vector<8x128xf32> -> vector<8x128xf32>
    %178 = arith.addf %176, %177 : vector<8x128xf32>
    %179 = math.tanh %178 : vector<8x128xf32>
    %cst_51 = arith.constant 0.000000e+00 : f32
    %180 = vector.broadcast %cst_51 : f32 to vector<8x128xf32>
    %181 = arith.subf %180, %178 : vector<8x128xf32>
    %182 = math.exp %181 : vector<8x128xf32>
    %cst_52 = arith.constant 1.000000e+00 : f32
    %183 = vector.broadcast %cst_52 : f32 to vector<8x128xf32>
    %184 = arith.addf %183, %182 : vector<8x128xf32>
    %185 = tpu.reciprocal %184 {approx = true} : vector<8x128xf32> -> vector<8x128xf32>
    %186 = arith.select %13, %179, %185 : vector<8x128xi1>, vector<8x128xf32>
    %187 = vector.extract_strided_slice %186 {offsets = [0, 0], sizes = [8, 32], strides = [1, 1]} : vector<8x128xf32> to vector<8x32xf32>
    %188 = vector.extract_strided_slice %186 {offsets = [0, 32], sizes = [8, 32], strides = [1, 1]} : vector<8x128xf32> to vector<8x32xf32>
    %189 = vector.extract_strided_slice %186 {offsets = [0, 64], sizes = [8, 32], strides = [1, 1]} : vector<8x128xf32> to vector<8x32xf32>
    %190 = vector.extract_strided_slice %186 {offsets = [0, 96], sizes = [8, 32], strides = [1, 1]} : vector<8x128xf32> to vector<8x32xf32>
    %191 = arith.mulf %188, %167 : vector<8x32xf32>
    %192 = arith.mulf %187, %189 : vector<8x32xf32>
    %193 = arith.addf %191, %192 : vector<8x32xf32>
    %194 = math.tanh %193 : vector<8x32xf32>
    %195 = arith.mulf %190, %194 : vector<8x32xf32>
    %196 = arith.index_cast %174 : i32 to index
    %c0_53 = arith.constant 0 : index
    %197 = vector.load %arg10[%196, %c0_53] : memref<64x32xf32, #tpu.memory_space<vmem>>, vector<8x32xf32>
    tpu.vector_store %arg10[%196, %c0_53], %195 {strides = array<i32>} : memref<64x32xf32, #tpu.memory_space<vmem>>, vector<8x32xf32>,
    %198 = arith.truncf %195 : vector<8x32xf32> to vector<8x32xbf16>
    %c7_i32 = arith.constant 7 : i32
    %c8_i32_54 = arith.constant 8 : i32
    %199 = arith.muli %c7_i32, %c8_i32_54 : i32
    %200 = tpu.assume_multiple %199, 8 : i32
    %201 = arith.index_cast %200 : i32 to index
    %c0_55 = arith.constant 0 : index
    %202 = vector.load %arg9[%201, %c0_55] : memref<64x128xf32, #tpu.memory_space<vmem>>, vector<8x128xf32>
    %cst_56 = arith.constant dense<0.000000e+00> : vector<8x128xf32>
    %203 = tpu.matmul %198, %7, %cst_56 {dimension_numbers = #tpu.dot_dimension_numbers<[1], [0], [0], [1], [0, 0, 1, 1], [], []>} : vector<8x32xbf16>, vector<32x128xbf16>, vector<8x128xf32> -> vector<8x128xf32>
    %204 = arith.addf %202, %203 : vector<8x128xf32>
    %205 = math.tanh %204 : vector<8x128xf32>
    %cst_57 = arith.constant 0.000000e+00 : f32
    %206 = vector.broadcast %cst_57 : f32 to vector<8x128xf32>
    %207 = arith.subf %206, %204 : vector<8x128xf32>
    %208 = math.exp %207 : vector<8x128xf32>
    %cst_58 = arith.constant 1.000000e+00 : f32
    %209 = vector.broadcast %cst_58 : f32 to vector<8x128xf32>
    %210 = arith.addf %209, %208 : vector<8x128xf32>
    %211 = tpu.reciprocal %210 {approx = true} : vector<8x128xf32> -> vector<8x128xf32>
    %212 = arith.select %13, %205, %211 : vector<8x128xi1>, vector<8x128xf32>
    %213 = vector.extract_strided_slice %212 {offsets = [0, 0], sizes = [8, 32], strides = [1, 1]} : vector<8x128xf32> to vector<8x32xf32>
    %214 = vector.extract_strided_slice %212 {offsets = [0, 32], sizes = [8, 32], strides = [1, 1]} : vector<8x128xf32> to vector<8x32xf32>
    %215 = vector.extract_strided_slice %212 {offsets = [0, 64], sizes = [8, 32], strides = [1, 1]} : vector<8x128xf32> to vector<8x32xf32>
    %216 = vector.extract_strided_slice %212 {offsets = [0, 96], sizes = [8, 32], strides = [1, 1]} : vector<8x128xf32> to vector<8x32xf32>
    %217 = arith.mulf %214, %193 : vector<8x32xf32>
    %218 = arith.mulf %213, %215 : vector<8x32xf32>
    %219 = arith.addf %217, %218 : vector<8x32xf32>
    %220 = math.tanh %219 : vector<8x32xf32>
    %221 = arith.mulf %216, %220 : vector<8x32xf32>
    %222 = arith.index_cast %200 : i32 to index
    %c0_59 = arith.constant 0 : index
    %223 = vector.load %arg10[%222, %c0_59] : memref<64x32xf32, #tpu.memory_space<vmem>>, vector<8x32xf32>
    tpu.vector_store %arg10[%222, %c0_59], %221 {strides = array<i32>} : memref<64x32xf32, #tpu.memory_space<vmem>>, vector<8x32xf32>,
    %224 = arith.truncf %221 : vector<8x32xf32> to vector<8x32xbf16>
    %c8_i32_60 = arith.constant 8 : i32
    %c0_61 = arith.constant 0 : index
    %c0_62 = arith.constant 0 : index
    %225 = vector.load %arg10[%c0_61, %c0_62] : memref<64x32xf32, #tpu.memory_space<vmem>>, vector<64x32xf32>
    %226 = arith.truncf %225 : vector<64x32xf32> to vector<64x32xbf16>
    %c0_63 = arith.constant 0 : index
    %c0_64 = arith.constant 0 : index
    %227 = vector.load %arg4[%c0_63, %c0_64] : memref<32x128xbf16, #tpu.memory_space<vmem>>, vector<32x128xbf16>
    %cst_65 = arith.constant dense<0.000000e+00> : vector<64x128xf32>
    %228 = tpu.matmul %226, %227, %cst_65 {dimension_numbers = #tpu.dot_dimension_numbers<[1], [0], [0], [1], [0, 0, 1, 1], [], []>} : vector<64x32xbf16>, vector<32x128xbf16>, vector<64x128xf32> -> vector<64x128xf32>
    %c0_66 = arith.constant 0 : index
    %c0_67 = arith.constant 0 : index
    %229 = vector.load %arg5[%c0_66, %c0_67] : memref<1x128xf32, #tpu.memory_space<vmem>>, vector<1x128xf32>
    %230 = vector.broadcast %229 : vector<1x128xf32> to vector<64x128xf32>
    %231 = arith.addf %228, %230 : vector<64x128xf32>
    %c0_68 = arith.constant 0 : index
    %c0_69 = arith.constant 0 : index
    %232 = vector.load %arg8[%c0_68, %c0_69] : memref<64x128xf32, #tpu.memory_space<vmem>>, vector<64x128xf32>
    tpu.vector_store %arg8[%c0_68, %c0_69], %231 {strides = array<i32>} : memref<64x128xf32, #tpu.memory_space<vmem>>, vector<64x128xf32>,
    return
  }
}

</mosaic_0001>

<llo_original>
// kernel: tpu_custom_call.1
$region0: #{tpu_custom_call.1}
  #allocation0 [shape = 'u32[]', space=smem, size = 0x4, offset = 0x4, fixed_abs, tag = 'smem constant byte address 0x4 - core index']
  #allocation1 [shape = 'u32[144,128]{1,0:T(1,128)}', space=vmem, size = 0x12000, scoped, tag = 'internal scratch']
  #allocation2 [shape = 'f32[64,128]{1,0:T(8,128)}', space=vmem, size = 0x8000, scoped, tag = 'scratch operand']
  #allocation3 [shape = 'f32[64,32]{1,0:T(8,128)}', space=vmem, size = 0x8000, scoped, tag = 'scratch operand']
  %s0 = inlined_call_operand.vmem [shape: bf16[64,16], index: 0, kind: input, shape index: {}]
  %s1 = inlined_call_operand.vmem [shape: bf16[16,128], index: 1, kind: input, shape index: {}]
  %s2 = inlined_call_operand.vmem [shape: bf16[32,128], index: 2, kind: input, shape index: {}]
  %s3 = inlined_call_operand.vmem [shape: f32[1,128], index: 3, kind: input, shape index: {}]
  %s4 = inlined_call_operand.vmem [shape: bf16[32,128], index: 4, kind: input, shape index: {}]
  %s5 = inlined_call_operand.vmem [shape: f32[1,128], index: 5, kind: input, shape index: {}]
  %s6 = inlined_call_operand.vmem [shape: f32[8,32], index: 6, kind: input, shape index: {}]
  %s7 = inlined_call_operand.vmem [shape: f32[8,32], index: 7, kind: input, shape index: {}]
  %s8 = inlined_call_operand.hbm [shape: f32[64,128], index: 8, kind: output, shape index: {}]
  %s9 = sld [smem:[#allocation0]]
  $region42: #{tpu_custom_call.1} parent=0
    _
  %s11 = ssub.s32 1, %s9
  %s12 = scalar_select 0, %s11, %s9
  $region1: #{tpu_custom_call.1} parent=0
    #allocation4 [shape = 'u8[32768]{0}', space=vmem, size = 0x8000, scoped, tag = 'output window, operand 0, single buffered']
    #allocation5 [shape = 's32[1]{0}', space=sflag, size = 0x4, scoped, tag = 'scoped memory for tpu_custom_call.1']
    %13 = vsyncpa [#allocation5], 0
    // Predicated region
    $region2: #{tpu_custom_call.1} parent=1 // pred_check
      _
    $region3: #{tpu_custom_call.1} parent=1 // pred_check_branch
      %15 = sbr.rel (0) target = $region5
    $region4: #{tpu_custom_call.1} parent=1 // pred_region
      _
    $region5: #{tpu_custom_call.1} parent=1 // pred_fallthru
      _
    // Predicated region
    $region6: #{tpu_custom_call.1} parent=1 // pred_check
      _
    $region7: #{tpu_custom_call.1} parent=1 // pred_check_branch
      %17 = sbr.rel (0) target = $region9
    $region8: #{tpu_custom_call.1} parent=1 // pred_region
      _
    $region9: #{tpu_custom_call.1} parent=1 // pred_fallthru
      _
    // Predicated region
    $region10: #{tpu_custom_call.1} parent=1 // pred_check
      _
    $region11: #{tpu_custom_call.1} parent=1 // pred_check_branch
      %19 = sbr.rel (0) target = $region13
    $region12: #{tpu_custom_call.1} parent=1 // pred_region
      _
    $region13: #{tpu_custom_call.1} parent=1 // pred_fallthru
      _
    // Predicated region
    $region14: #{tpu_custom_call.1} parent=1 // pred_check
      _
    $region15: #{tpu_custom_call.1} parent=1 // pred_check_branch
      %21 = sbr.rel (0) target = $region17
    $region16: #{tpu_custom_call.1} parent=1 // pred_region
      _
    $region17: #{tpu_custom_call.1} parent=1 // pred_fallthru
      _
    // Predicated region
    $region18: #{tpu_custom_call.1} parent=1 // pred_check
      _
    $region19: #{tpu_custom_call.1} parent=1 // pred_check_branch
      %23 = sbr.rel (0) target = $region21
    $region20: #{tpu_custom_call.1} parent=1 // pred_region
      _
    $region21: #{tpu_custom_call.1} parent=1 // pred_fallthru
      _
    // Predicated region
    $region22: #{tpu_custom_call.1} parent=1 // pred_check
      _
    $region23: #{tpu_custom_call.1} parent=1 // pred_check_branch
      %25 = sbr.rel (0) target = $region25
    $region24: #{tpu_custom_call.1} parent=1 // pred_region
      _
    $region25: #{tpu_custom_call.1} parent=1 // pred_fallthru
      _
    // Predicated region
    $region26: #{tpu_custom_call.1} parent=1 // pred_check
      _
    $region27: #{tpu_custom_call.1} parent=1 // pred_check_branch
      %27 = sbr.rel (0) target = $region29
    $region28: #{tpu_custom_call.1} parent=1 // pred_region
      _
    $region29: #{tpu_custom_call.1} parent=1 // pred_fallthru
      _
    // Predicated region
    $region30: #{tpu_custom_call.1} parent=1 // pred_check
      _
    $region31: #{tpu_custom_call.1} parent=1 // pred_check_branch
      %29 = sbr.rel (0) target = $region33
    $region32: #{tpu_custom_call.1} parent=1 // pred_region
      _
    $region33: #{tpu_custom_call.1} parent=1 // pred_fallthru
      _
    %v31 = vld [vmem:[%s0] sm:$0xf]
    %v32 = vld [vmem:[%s0 + $0x4] sm:$0xf]
    %v33 = vld [vmem:[%s0 + $0x8] sm:$0xf]
    %v34 = vld [vmem:[%s0 + $0xc] sm:$0xf]
    %v35 = vld [vmem:[%s0 + $0x10] sm:$0xf]
    %v36 = vld [vmem:[%s0 + $0x14] sm:$0xf]
    %v37 = vld [vmem:[%s0 + $0x18] sm:$0xf]
    %v38 = vld [vmem:[%s0 + $0x1c] sm:$0xf]
    %v39 = vld [vmem:[%s1] sm:$0xf]
    %v40 = vld [vmem:[%s1 + $0x4] sm:$0xf]
    %v41 = vld [vmem:[%s3] sm:$0x1]
    %v43 = vlaneseq
    %v44 = vshrl.u32 %v43, 7
    %v45 = vsub.s32 0, %v44
    %v46 = vrot.slane %v41, %v45
    %v56 = vunpack.c.l.b16 %v31
    %v57 = vunpack.c.l.b16 %v32
    %v58 = vunpack.c.l.b16 %v33
    %v59 = vunpack.c.l.b16 %v34
    %v60 = vunpack.c.l.b16 %v35
    %v61 = vunpack.c.l.b16 %v36
    %v62 = vunpack.c.l.b16 %v37
    %v63 = vunpack.c.l.b16 %v38
    %v64 = vpack.c.b16 %v57, %v56
    %v65 = vpack.c.b16 %v59, %v58
    %v66 = vpack.c.b16 %v61, %v60
    %v67 = vpack.c.b16 %v63, %v62
    %v70 = vunpack.c.l.b16 %v39
    %v71 = vunpack.c.l.b16 %v40
    %v72 = vpack.c.b16 %v71, %v70
    %vm74 = vcmask 130048
    %v76 = vsel %vm74, %v64, 0
    %v79 = vsel %vm74, %v65, 0
    %v82 = vsel %vm74, %v66, 0
    %v85 = vsel %vm74, %v67, 0
    %87 = vmatprep.subr.bf16.mxu0 0
    %88 = vmatpush1.bf16.msra.mxu0 %v72
    %89 = vmatprep.subr.bf16.mxu0 0
    %90 = vmatpush1.bf16.msra.mxu0 0
    %91 = vmatprep.subr.bf16.mxu0 0
    %92 = vmatpush1.bf16.msra.mxu0 0
    %93 = vmatprep.subr.bf16.mxu0 0
    %94 = vmatpush1.bf16.msra.mxu0 0
    %95 = vmatprep.subr.bf16.mxu0 0
    %96 = vmatpush1.bf16.msra.mxu0 0
    %97 = vmatprep.subr.bf16.mxu0 0
    %98 = vmatpush1.bf16.msra.mxu0 0
    %99 = vmatprep.subr.bf16.mxu0 0
    %100 = vmatpush1.bf16.msra.mxu0 0
    %101 = vmatprep.subr.bf16.mxu0 0
    %102 = vmatpush1.bf16.msra.mxu0 0
    %103 = vmatprep.subr.bf16.mxu0 0
    %104 = vmatpush1.bf16.msra.mxu0 0
    %105 = vmatprep.subr.bf16.mxu0 0
    %106 = vmatpush1.bf16.msra.mxu0 0
    %107 = vmatprep.subr.bf16.mxu0 0
    %108 = vmatpush1.bf16.msra.mxu0 0
    %109 = vmatprep.subr.bf16.mxu0 0
    %110 = vmatpush1.bf16.msra.mxu0 0
    %111 = vmatprep.subr.bf16.mxu0 0
    %112 = vmatpush1.bf16.msra.mxu0 0
    %113 = vmatprep.subr.bf16.mxu0 0
    %114 = vmatpush1.bf16.msra.mxu0 0
    %115 = vmatprep.subr.bf16.mxu0 0
    %116 = vmatpush1.bf16.msra.mxu0 0
    %117 = vmatprep.subr.bf16.mxu0 0
    %118 = vmatpush1.bf16.msra.mxu0 0
    %119 = vmatprep.mubr.bf16.mxu0 0
    %120 = vmatmul.mubr.bf16.gmra.mrb[0].mxu0 %v76
    %v121 = vpop.f32.mrb[0].mxu0
    %v122 = vadd.f32 %v46, %v121
    %v123 = vpop.f32.mrb[0].mxu0
    %v124 = vpop.f32.mrb[0].mxu0
    %v125 = vadd.f32 %v46, %v124
    %v126 = vpop.f32.mrb[0].mxu0
    %127 = vmatprep.mubr.bf16.mxu0 0
    %128 = vmatmul.mubr.bf16.gmra.mrb[0].mxu0 %v79
    %v129 = vpop.f32.mrb[0].mxu0
    %v130 = vadd.f32 %v46, %v129
    %v131 = vpop.f32.mrb[0].mxu0
    %v132 = vpop.f32.mrb[0].mxu0
    %v133 = vadd.f32 %v46, %v132
    %v134 = vpop.f32.mrb[0].mxu0
    %135 = vmatprep.mubr.bf16.mxu0 0
    %136 = vmatmul.mubr.bf16.gmra.mrb[0].mxu0 %v82
    %v137 = vpop.f32.mrb[0].mxu0
    %v138 = vadd.f32 %v46, %v137
    %v139 = vpop.f32.mrb[0].mxu0
    %v140 = vpop.f32.mrb[0].mxu0
    %v141 = vadd.f32 %v46, %v140
    %v142 = vpop.f32.mrb[0].mxu0
    %143 = vmatprep.mubr.bf16.mxu0 0
    %144 = vmatmul.mubr.bf16.gmra.mrb[0].mxu0 %v85
    %v145 = vpop.f32.mrb[0].mxu0
    %v146 = vadd.f32 %v46, %v145
    %v147 = vpop.f32.mrb[0].mxu0
    %v148 = vpop.f32.mrb[0].mxu0
    %v149 = vadd.f32 %v46, %v148
    %v150 = vpop.f32.mrb[0].mxu0
    %151 = vdwg.mxu0
    %152 = vst [vmem:[#allocation2] sm:$0xff] %v122
    %153 = vst [vmem:[#allocation2 + $0x8] sm:$0xff] %v125
    %154 = vst [vmem:[#allocation2 + $0x10] sm:$0xff] %v130
    %155 = vst [vmem:[#allocation2 + $0x18] sm:$0xff] %v133
    %156 = vst [vmem:[#allocation2 + $0x20] sm:$0xff] %v138
    %157 = vst [vmem:[#allocation2 + $0x28] sm:$0xff] %v141
    %158 = vst [vmem:[#allocation2 + $0x30] sm:$0xff] %v146
    %159 = vst [vmem:[#allocation2 + $0x38] sm:$0xff] %v149
    %v160 = vld [vmem:[%s2] sm:$0xf]
    %v161 = vld [vmem:[%s2 + $0x4] sm:$0xf]
    %v162 = vld [vmem:[%s2 + $0x8] sm:$0xf]
    %v163 = vld [vmem:[%s2 + $0xc] sm:$0xf]
    %v164 = vlaneseq
    %v165 = vand.u32 %v164, 127
    %vm166 = vcmp.ge.s32.totalorder %v165, 64
    %vm167 = vcmp.lt.s32.totalorder %v165, 96
    %vm168 = vmand %vm166, %vm167
    %v169 = vld [vmem:[%s6] sm:$0xff]
    %v170 = vpack.c.bf16 %v169, %v169
    %v171 = vld [vmem:[%s7] sm:$0xff]
    %v172 = vld [vmem:[#allocation2] sm:$0xff]
    %v177 = vunpack.c.l.b16 %v160
    %v178 = vunpack.c.l.b16 %v161
    %v179 = vunpack.c.l.b16 %v162
    %v180 = vunpack.c.l.b16 %v163
    %v181 = vpack.c.b16 %v178, %v177
    %v182 = vpack.c.b16 %v180, %v179
    %vm185 = vcmask 261120
    %v187 = vsel %vm185, %v170, 0
    %189 = vmatprep.subr.bf16.mxu0 0
    %190 = vmatpush1.bf16.msra.mxu0 %v181
    %191 = vmatprep.subr.bf16.mxu0 0
    %192 = vmatpush1.bf16.msra.mxu0 %v182
    %193 = vmatprep.subr.bf16.mxu0 0
    %194 = vmatpush1.bf16.msra.mxu0 0
    %195 = vmatprep.subr.bf16.mxu0 0
    %196 = vmatpush1.bf16.msra.mxu0 0
    %197 = vmatprep.subr.bf16.mxu0 0
    %198 = vmatpush1.bf16.msra.mxu0 0
    %199 = vmatprep.subr.bf16.mxu0 0
    %200 = vmatpush1.bf16.msra.mxu0 0
    %201 = vmatprep.subr.bf16.mxu0 0
    %202 = vmatpush1.bf16.msra.mxu0 0
    %203 = vmatprep.subr.bf16.mxu0 0
    %204 = vmatpush1.bf16.msra.mxu0 0
    %205 = vmatprep.subr.bf16.mxu0 0
    %206 = vmatpush1.bf16.msra.mxu0 0
    %207 = vmatprep.subr.bf16.mxu0 0
    %208 = vmatpush1.bf16.msra.mxu0 0
    %209 = vmatprep.subr.bf16.mxu0 0
    %210 = vmatpush1.bf16.msra.mxu0 0
    %211 = vmatprep.subr.bf16.mxu0 0
    %212 = vmatpush1.bf16.msra.mxu0 0
    %213 = vmatprep.subr.bf16.mxu0 0
    %214 = vmatpush1.bf16.msra.mxu0 0
    %215 = vmatprep.subr.bf16.mxu0 0
    %216 = vmatpush1.bf16.msra.mxu0 0
    %217 = vmatprep.subr.bf16.mxu0 0
    %218 = vmatpush1.bf16.msra.mxu0 0
    %219 = vmatprep.subr.bf16.mxu0 0
    %220 = vmatpush1.bf16.msra.mxu0 0
    %221 = vmatprep.mubr.bf16.mxu0 0
    %222 = vmatmul.mubr.bf16.gmra.mrb[0].mxu0 %v187
    %v223 = vpop.f32.mrb[0].mxu0
    %v224 = vadd.f32 0.0, %v223
    %v225 = vpop.f32.mrb[0].mxu0
    %v226 = vpop.f32.mrb[0].mxu0
    %v227 = vpop.f32.mrb[0].mxu0
    %228 = vdwg.mxu0
    %v229 = vadd.f32 %v172, %v224
    %v230 = vtanh.pop %v229
    %v231 = vsub.f32 0.0, %v229
    %v232 = vmul.f32 %v231, 1.442695
    %v233 = vpow.pop %v232
    %v234 = vadd.f32 %v233, 1.0
    %v235 = vrcp.pop %v234
    %v236 = vsel %vm168, %v230, %v235
    %238 = vrot.lane.b32.xlu0 %v171, 32
    %v239 = vpop.permute.xlu0 %238
    %v241 = vmul.f32 %v236, %v239
    %243 = vrot.lane.b32.xlu0 %v236, 64
    %v244 = vpop.permute.xlu0 %243
    %v246 = vmul.f32 %v236, %v244
    %248 = vrot.lane.b32.xlu0 %v246, 32
    %v249 = vpop.permute.xlu0 %248
    %v251 = vadd.f32 %v241, %v249
    %v252 = vtanh.pop %v251
    %254 = vrot.lane.b32.xlu0 %v252, 64
    %v255 = vpop.permute.xlu0 %254
    %v257 = vmul.f32 %v236, %v255
    %259 = vrot.lane.b32.xlu0 %v257, 32
    %v260 = vpop.permute.xlu0 %259
    %262 = vst.msk [vmem:[#allocation3] sm:$0xff] %vm185, %v260
    %v263 = vpack.c.bf16 %v257, %v257
    %s264 = scalar_lea.vmem [#allocation2], 8
    %v265 = vld [vmem:[%s264] sm:$0xff]
    %267 = vrot.lane.b32.xlu0 %v263, 32
    %v268 = vpop.permute.xlu0 %267
    %v270 = vsel %vm185, %v268, 0
    %272 = vmatprep.subr.bf16.mxu0 0
    %273 = vmatpush1.bf16.msra.mxu0 %v181
    %274 = vmatprep.subr.bf16.mxu0 0
    %275 = vmatpush1.bf16.msra.mxu0 %v182
    %276 = vmatprep.subr.bf16.mxu0 0
    %277 = vmatpush1.bf16.msra.mxu0 0
    %278 = vmatprep.subr.bf16.mxu0 0
    %279 = vmatpush1.bf16.msra.mxu0 0
    %280 = vmatprep.subr.bf16.mxu0 0
    %281 = vmatpush1.bf16.msra.mxu0 0
    %282 = vmatprep.subr.bf16.mxu0 0
    %283 = vmatpush1.bf16.msra.mxu0 0
    %284 = vmatprep.subr.bf16.mxu0 0
    %285 = vmatpush1.bf16.msra.mxu0 0
    %286 = vmatprep.subr.bf16.mxu0 0
    %287 = vmatpush1.bf16.msra.mxu0 0
    %288 = vmatprep.subr.bf16.mxu0 0
    %289 = vmatpush1.bf16.msra.mxu0 0
    %290 = vmatprep.subr.bf16.mxu0 0
    %291 = vmatpush1.bf16.msra.mxu0 0
    %292 = vmatprep.subr.bf16.mxu0 0
    %293 = vmatpush1.bf16.msra.mxu0 0
    %294 = vmatprep.subr.bf16.mxu0 0
    %295 = vmatpush1.bf16.msra.mxu0 0
    %296 = vmatprep.subr.bf16.mxu0 0
    %297 = vmatpush1.bf16.msra.mxu0 0
    %298 = vmatprep.subr.bf16.mxu0 0
    %299 = vmatpush1.bf16.msra.mxu0 0
    %300 = vmatprep.subr.bf16.mxu0 0
    %301 = vmatpush1.bf16.msra.mxu0 0
    %302 = vmatprep.subr.bf16.mxu0 0
    %303 = vmatpush1.bf16.msra.mxu0 0
    %304 = vmatprep.mubr.bf16.mxu0 0
    %305 = vmatmul.mubr.bf16.gmra.mrb[0].mxu0 %v270
    %v306 = vpop.f32.mrb[0].mxu0
    %v307 = vadd.f32 0.0, %v306
    %v308 = vpop.f32.mrb[0].mxu0
    %v309 = vpop.f32.mrb[0].mxu0
    %v310 = vpop.f32.mrb[0].mxu0
    %311 = vdwg.mxu0
    %v312 = vadd.f32 %v265, %v307
    %v313 = vtanh.pop %v312
    %v314 = vsub.f32 0.0, %v312
    %v315 = vmul.f32 %v314, 1.442695
    %v316 = vpow.pop %v315
    %v317 = vadd.f32 %v316, 1.0
    %v318 = vrcp.pop %v317
    %v319 = vsel %vm168, %v313, %v318
    %v320 = vmul.f32 %v319, %v251
    %322 = vrot.lane.b32.xlu0 %v319, 64
    %v323 = vpop.permute.xlu0 %322
    %v325 = vmul.f32 %v319, %v323
    %327 = vrot.lane.b32.xlu0 %v325, 32
    %v328 = vpop.permute.xlu0 %327
    %v330 = vadd.f32 %v320, %v328
    %v331 = vtanh.pop %v330
    %333 = vrot.lane.b32.xlu0 %v331, 64
    %v334 = vpop.permute.xlu0 %333
    %v336 = vmul.f32 %v319, %v334
    %338 = vrot.lane.b32.xlu0 %v336, 32
    %v339 = vpop.permute.xlu0 %338
    %s341 = scalar_lea.vmem [#allocation3], 8
    %342 = vst.msk [vmem:[%s341] sm:$0xff] %vm185, %v339
    %v343 = vpack.c.bf16 %v336, %v336
    %s344 = scalar_lea.vmem [#allocation2], 16
    %v345 = vld [vmem:[%s344] sm:$0xff]
    %347 = vrot.lane.b32.xlu0 %v343, 32
    %v348 = vpop.permute.xlu0 %347
    %v350 = vsel %vm185, %v348, 0
    %352 = vmatprep.subr.bf16.mxu0 0
    %353 = vmatpush1.bf16.msra.mxu0 %v181
    %354 = vmatprep.subr.bf16.mxu0 0
    %355 = vmatpush1.bf16.msra.mxu0 %v182
    %356 = vmatprep.subr.bf16.mxu0 0
    %357 = vmatpush1.bf16.msra.mxu0 0
    %358 = vmatprep.subr.bf16.mxu0 0
    %359 = vmatpush1.bf16.msra.mxu0 0
    %360 = vmatprep.subr.bf16.mxu0 0
    %361 = vmatpush1.bf16.msra.mxu0 0
    %362 = vmatprep.subr.bf16.mxu0 0
    %363 = vmatpush1.bf16.msra.mxu0 0
    %364 = vmatprep.subr.bf16.mxu0 0
    %365 = vmatpush1.bf16.msra.mxu0 0
    %366 = vmatprep.subr.bf16.mxu0 0
    %367 = vmatpush1.bf16.msra.mxu0 0
    %368 = vmatprep.subr.bf16.mxu0 0
    %369 = vmatpush1.bf16.msra.mxu0 0
    %370 = vmatprep.subr.bf16.mxu0 0
    %371 = vmatpush1.bf16.msra.mxu0 0
    %372 = vmatprep.subr.bf16.mxu0 0
    %373 = vmatpush1.bf16.msra.mxu0 0
    %374 = vmatprep.subr.bf16.mxu0 0
    %375 = vmatpush1.bf16.msra.mxu0 0
    %376 = vmatprep.subr.bf16.mxu0 0
    %377 = vmatpush1.bf16.msra.mxu0 0
    %378 = vmatprep.subr.bf16.mxu0 0
    %379 = vmatpush1.bf16.msra.mxu0 0
    %380 = vmatprep.subr.bf16.mxu0 0
    %381 = vmatpush1.bf16.msra.mxu0 0
    %382 = vmatprep.subr.bf16.mxu0 0
    %383 = vmatpush1.bf16.msra.mxu0 0
    %384 = vmatprep.mubr.bf16.mxu0 0
    %385 = vmatmul.mubr.bf16.gmra.mrb[0].mxu0 %v350
    %v386 = vpop.f32.mrb[0].mxu0
    %v387 = vadd.f32 0.0, %v386
    %v388 = vpop.f32.mrb[0].mxu0
    %v389 = vpop.f32.mrb[0].mxu0
    %v390 = vpop.f32.mrb[0].mxu0
    %391 = vdwg.mxu0
    %v392 = vadd.f32 %v345, %v387
    %v393 = vtanh.pop %v392
    %v394 = vsub.f32 0.0, %v392
    %v395 = vmul.f32 %v394, 1.442695
    %v396 = vpow.pop %v395
    %v397 = vadd.f32 %v396, 1.0
    %v398 = vrcp.pop %v397
    %v399 = vsel %vm168, %v393, %v398
    %v400 = vmul.f32 %v399, %v330
    %402 = vrot.lane.b32.xlu0 %v399, 64
    %v403 = vpop.permute.xlu0 %402
    %v405 = vmul.f32 %v399, %v403
    %407 = vrot.lane.b32.xlu0 %v405, 32
    %v408 = vpop.permute.xlu0 %407
    %v410 = vadd.f32 %v400, %v408
    %v411 = vtanh.pop %v410
    %413 = vrot.lane.b32.xlu0 %v411, 64
    %v414 = vpop.permute.xlu0 %413
    %v416 = vmul.f32 %v399, %v414
    %418 = vrot.lane.b32.xlu0 %v416, 32
    %v419 = vpop.permute.xlu0 %418
    %s421 = scalar_lea.vmem [#allocation3], 16
    %422 = vst.msk [vmem:[%s421] sm:$0xff] %vm185, %v419
    %v423 = vpack.c.bf16 %v416, %v416
    %s424 = scalar_lea.vmem [#allocation2], 24
    %v425 = vld [vmem:[%s424] sm:$0xff]
    %427 = vrot.lane.b32.xlu0 %v423, 32
    %v428 = vpop.permute.xlu0 %427
    %v430 = vsel %vm185, %v428, 0
    %432 = vmatprep.subr.bf16.mxu0 0
    %433 = vmatpush1.bf16.msra.mxu0 %v181
    %434 = vmatprep.subr.bf16.mxu0 0
    %435 = vmatpush1.bf16.msra.mxu0 %v182
    %436 = vmatprep.subr.bf16.mxu0 0
    %437 = vmatpush1.bf16.msra.mxu0 0
    %438 = vmatprep.subr.bf16.mxu0 0
    %439 = vmatpush1.bf16.msra.mxu0 0
    %440 = vmatprep.subr.bf16.mxu0 0
    %441 = vmatpush1.bf16.msra.mxu0 0
    %442 = vmatprep.subr.bf16.mxu0 0
    %443 = vmatpush1.bf16.msra.mxu0 0
    %444 = vmatprep.subr.bf16.mxu0 0
    %445 = vmatpush1.bf16.msra.mxu0 0
    %446 = vmatprep.subr.bf16.mxu0 0
    %447 = vmatpush1.bf16.msra.mxu0 0
    %448 = vmatprep.subr.bf16.mxu0 0
    %449 = vmatpush1.bf16.msra.mxu0 0
    %450 = vmatprep.subr.bf16.mxu0 0
    %451 = vmatpush1.bf16.msra.mxu0 0
    %452 = vmatprep.subr.bf16.mxu0 0
    %453 = vmatpush1.bf16.msra.mxu0 0
    %454 = vmatprep.subr.bf16.mxu0 0
    %455 = vmatpush1.bf16.msra.mxu0 0
    %456 = vmatprep.subr.bf16.mxu0 0
    %457 = vmatpush1.bf16.msra.mxu0 0
    %458 = vmatprep.subr.bf16.mxu0 0
    %459 = vmatpush1.bf16.msra.mxu0 0
    %460 = vmatprep.subr.bf16.mxu0 0
    %461 = vmatpush1.bf16.msra.mxu0 0
    %462 = vmatprep.subr.bf16.mxu0 0
    %463 = vmatpush1.bf16.msra.mxu0 0
    %464 = vmatprep.mubr.bf16.mxu0 0
    %465 = vmatmul.mubr.bf16.gmra.mrb[0].mxu0 %v430
    %v466 = vpop.f32.mrb[0].mxu0
    %v467 = vadd.f32 0.0, %v466
    %v468 = vpop.f32.mrb[0].mxu0
    %v469 = vpop.f32.mrb[0].mxu0
    %v470 = vpop.f32.mrb[0].mxu0
    %471 = vdwg.mxu0
    %v472 = vadd.f32 %v425, %v467
    %v473 = vtanh.pop %v472
    %v474 = vsub.f32 0.0, %v472
    %v475 = vmul.f32 %v474, 1.442695
    %v476 = vpow.pop %v475
    %v477 = vadd.f32 %v476, 1.0
    %v478 = vrcp.pop %v477
    %v479 = vsel %vm168, %v473, %v478
    %v480 = vmul.f32 %v479, %v410
    %482 = vrot.lane.b32.xlu0 %v479, 64
    %v483 = vpop.permute.xlu0 %482
    %v485 = vmul.f32 %v479, %v483
    %487 = vrot.lane.b32.xlu0 %v485, 32
    %v488 = vpop.permute.xlu0 %487
    %v490 = vadd.f32 %v480, %v488
    %v491 = vtanh.pop %v490
    %493 = vrot.lane.b32.xlu0 %v491, 64
    %v494 = vpop.permute.xlu0 %493
    %v496 = vmul.f32 %v479, %v494
    %498 = vrot.lane.b32.xlu0 %v496, 32
    %v499 = vpop.permute.xlu0 %498
    %s501 = scalar_lea.vmem [#allocation3], 24
    %502 = vst.msk [vmem:[%s501] sm:$0xff] %vm185, %v499
    %v503 = vpack.c.bf16 %v496, %v496
    %s504 = scalar_lea.vmem [#allocation2], 32
    %v505 = vld [vmem:[%s504] sm:$0xff]
    %507 = vrot.lane.b32.xlu0 %v503, 32
    %v508 = vpop.permute.xlu0 %507
    %v510 = vsel %vm185, %v508, 0
    %512 = vmatprep.subr.bf16.mxu0 0
    %513 = vmatpush1.bf16.msra.mxu0 %v181
    %514 = vmatprep.subr.bf16.mxu0 0
    %515 = vmatpush1.bf16.msra.mxu0 %v182
    %516 = vmatprep.subr.bf16.mxu0 0
    %517 = vmatpush1.bf16.msra.mxu0 0
    %518 = vmatprep.subr.bf16.mxu0 0
    %519 = vmatpush1.bf16.msra.mxu0 0
    %520 = vmatprep.subr.bf16.mxu0 0
    %521 = vmatpush1.bf16.msra.mxu0 0
    %522 = vmatprep.subr.bf16.mxu0 0
    %523 = vmatpush1.bf16.msra.mxu0 0
    %524 = vmatprep.subr.bf16.mxu0 0
    %525 = vmatpush1.bf16.msra.mxu0 0
    %526 = vmatprep.subr.bf16.mxu0 0
    %527 = vmatpush1.bf16.msra.mxu0 0
    %528 = vmatprep.subr.bf16.mxu0 0
    %529 = vmatpush1.bf16.msra.mxu0 0
    %530 = vmatprep.subr.bf16.mxu0 0
    %531 = vmatpush1.bf16.msra.mxu0 0
    %532 = vmatprep.subr.bf16.mxu0 0
    %533 = vmatpush1.bf16.msra.mxu0 0
    %534 = vmatprep.subr.bf16.mxu0 0
    %535 = vmatpush1.bf16.msra.mxu0 0
    %536 = vmatprep.subr.bf16.mxu0 0
    %537 = vmatpush1.bf16.msra.mxu0 0
    %538 = vmatprep.subr.bf16.mxu0 0
    %539 = vmatpush1.bf16.msra.mxu0 0
    %540 = vmatprep.subr.bf16.mxu0 0
    %541 = vmatpush1.bf16.msra.mxu0 0
    %542 = vmatprep.subr.bf16.mxu0 0
    %543 = vmatpush1.bf16.msra.mxu0 0
    %544 = vmatprep.mubr.bf16.mxu0 0
    %545 = vmatmul.mubr.bf16.gmra.mrb[0].mxu0 %v510
    %v546 = vpop.f32.mrb[0].mxu0
    %v547 = vadd.f32 0.0, %v546
    %v548 = vpop.f32.mrb[0].mxu0
    %v549 = vpop.f32.mrb[0].mxu0
    %v550 = vpop.f32.mrb[0].mxu0
    %551 = vdwg.mxu0
    %v552 = vadd.f32 %v505, %v547
    %v553 = vtanh.pop %v552
    %v554 = vsub.f32 0.0, %v552
    %v555 = vmul.f32 %v554, 1.442695
    %v556 = vpow.pop %v555
    %v557 = vadd.f32 %v556, 1.0
    %v558 = vrcp.pop %v557
    %v559 = vsel %vm168, %v553, %v558
    %v560 = vmul.f32 %v559, %v490
    %562 = vrot.lane.b32.xlu0 %v559, 64
    %v563 = vpop.permute.xlu0 %562
    %v565 = vmul.f32 %v559, %v563
    %567 = vrot.lane.b32.xlu0 %v565, 32
    %v568 = vpop.permute.xlu0 %567
    %v570 = vadd.f32 %v560, %v568
    %v571 = vtanh.pop %v570
    %573 = vrot.lane.b32.xlu0 %v571, 64
    %v574 = vpop.permute.xlu0 %573
    %v576 = vmul.f32 %v559, %v574
    %578 = vrot.lane.b32.xlu0 %v576, 32
    %v579 = vpop.permute.xlu0 %578
    %s581 = scalar_lea.vmem [#allocation3], 32
    %582 = vst.msk [vmem:[%s581] sm:$0xff] %vm185, %v579
    %v583 = vpack.c.bf16 %v576, %v576
    %s584 = scalar_lea.vmem [#allocation2], 40
    %v585 = vld [vmem:[%s584] sm:$0xff]
    %587 = vrot.lane.b32.xlu0 %v583, 32
    %v588 = vpop.permute.xlu0 %587
    %v590 = vsel %vm185, %v588, 0
    %592 = vmatprep.subr.bf16.mxu0 0
    %593 = vmatpush1.bf16.msra.mxu0 %v181
    %594 = vmatprep.subr.bf16.mxu0 0
    %595 = vmatpush1.bf16.msra.mxu0 %v182
    %596 = vmatprep.subr.bf16.mxu0 0
    %597 = vmatpush1.bf16.msra.mxu0 0
    %598 = vmatprep.subr.bf16.mxu0 0
    %599 = vmatpush1.bf16.msra.mxu0 0
    %600 = vmatprep.subr.bf16.mxu0 0
    %601 = vmatpush1.bf16.msra.mxu0 0
    %602 = vmatprep.subr.bf16.mxu0 0
    %603 = vmatpush1.bf16.msra.mxu0 0
    %604 = vmatprep.subr.bf16.mxu0 0
    %605 = vmatpush1.bf16.msra.mxu0 0
    %606 = vmatprep.subr.bf16.mxu0 0
    %607 = vmatpush1.bf16.msra.mxu0 0
    %608 = vmatprep.subr.bf16.mxu0 0
    %609 = vmatpush1.bf16.msra.mxu0 0
    %610 = vmatprep.subr.bf16.mxu0 0
    %611 = vmatpush1.bf16.msra.mxu0 0
    %612 = vmatprep.subr.bf16.mxu0 0
    %613 = vmatpush1.bf16.msra.mxu0 0
    %614 = vmatprep.subr.bf16.mxu0 0
    %615 = vmatpush1.bf16.msra.mxu0 0
    %616 = vmatprep.subr.bf16.mxu0 0
    %617 = vmatpush1.bf16.msra.mxu0 0
    %618 = vmatprep.subr.bf16.mxu0 0
    %619 = vmatpush1.bf16.msra.mxu0 0
    %620 = vmatprep.subr.bf16.mxu0 0
    %621 = vmatpush1.bf16.msra.mxu0 0
    %622 = vmatprep.subr.bf16.mxu0 0
    %623 = vmatpush1.bf16.msra.mxu0 0
    %624 = vmatprep.mubr.bf16.mxu0 0
    %625 = vmatmul.mubr.bf16.gmra.mrb[0].mxu0 %v590
    %v626 = vpop.f32.mrb[0].mxu0
    %v627 = vadd.f32 0.0, %v626
    %v628 = vpop.f32.mrb[0].mxu0
    %v629 = vpop.f32.mrb[0].mxu0
    %v630 = vpop.f32.mrb[0].mxu0
    %631 = vdwg.mxu0
    %v632 = vadd.f32 %v585, %v627
    %v633 = vtanh.pop %v632
    %v634 = vsub.f32 0.0, %v632
    %v635 = vmul.f32 %v634, 1.442695
    %v636 = vpow.pop %v635
    %v637 = vadd.f32 %v636, 1.0
    %v638 = vrcp.pop %v637
    %v639 = vsel %vm168, %v633, %v638
    %v640 = vmul.f32 %v639, %v570
    %642 = vrot.lane.b32.xlu0 %v639, 64
    %v643 = vpop.permute.xlu0 %642
    %v645 = vmul.f32 %v639, %v643
    %647 = vrot.lane.b32.xlu0 %v645, 32
    %v648 = vpop.permute.xlu0 %647
    %v650 = vadd.f32 %v640, %v648
    %v651 = vtanh.pop %v650
    %653 = vrot.lane.b32.xlu0 %v651, 64
    %v654 = vpop.permute.xlu0 %653
    %v656 = vmul.f32 %v639, %v654
    %658 = vrot.lane.b32.xlu0 %v656, 32
    %v659 = vpop.permute.xlu0 %658
    %s661 = scalar_lea.vmem [#allocation3], 40
    %662 = vst.msk [vmem:[%s661] sm:$0xff] %vm185, %v659
    %v663 = vpack.c.bf16 %v656, %v656
    %s664 = scalar_lea.vmem [#allocation2], 48
    %v665 = vld [vmem:[%s664] sm:$0xff]
    %667 = vrot.lane.b32.xlu0 %v663, 32
    %v668 = vpop.permute.xlu0 %667
    %v670 = vsel %vm185, %v668, 0
    %672 = vmatprep.subr.bf16.mxu0 0
    %673 = vmatpush1.bf16.msra.mxu0 %v181
    %674 = vmatprep.subr.bf16.mxu0 0
    %675 = vmatpush1.bf16.msra.mxu0 %v182
    %676 = vmatprep.subr.bf16.mxu0 0
    %677 = vmatpush1.bf16.msra.mxu0 0
    %678 = vmatprep.subr.bf16.mxu0 0
    %679 = vmatpush1.bf16.msra.mxu0 0
    %680 = vmatprep.subr.bf16.mxu0 0
    %681 = vmatpush1.bf16.msra.mxu0 0
    %682 = vmatprep.subr.bf16.mxu0 0
    %683 = vmatpush1.bf16.msra.mxu0 0
    %684 = vmatprep.subr.bf16.mxu0 0
    %685 = vmatpush1.bf16.msra.mxu0 0
    %686 = vmatprep.subr.bf16.mxu0 0
    %687 = vmatpush1.bf16.msra.mxu0 0
    %688 = vmatprep.subr.bf16.mxu0 0
    %689 = vmatpush1.bf16.msra.mxu0 0
    %690 = vmatprep.subr.bf16.mxu0 0
    %691 = vmatpush1.bf16.msra.mxu0 0
    %692 = vmatprep.subr.bf16.mxu0 0
    %693 = vmatpush1.bf16.msra.mxu0 0
    %694 = vmatprep.subr.bf16.mxu0 0
    %695 = vmatpush1.bf16.msra.mxu0 0
    %696 = vmatprep.subr.bf16.mxu0 0
    %697 = vmatpush1.bf16.msra.mxu0 0
    %698 = vmatprep.subr.bf16.mxu0 0
    %699 = vmatpush1.bf16.msra.mxu0 0
    %700 = vmatprep.subr.bf16.mxu0 0
    %701 = vmatpush1.bf16.msra.mxu0 0
    %702 = vmatprep.subr.bf16.mxu0 0
    %703 = vmatpush1.bf16.msra.mxu0 0
    %704 = vmatprep.mubr.bf16.mxu0 0
    %705 = vmatmul.mubr.bf16.gmra.mrb[0].mxu0 %v670
    %v706 = vpop.f32.mrb[0].mxu0
    %v707 = vadd.f32 0.0, %v706
    %v708 = vpop.f32.mrb[0].mxu0
    %v709 = vpop.f32.mrb[0].mxu0
    %v710 = vpop.f32.mrb[0].mxu0
    %711 = vdwg.mxu0
    %v712 = vadd.f32 %v665, %v707
    %v713 = vtanh.pop %v712
    %v714 = vsub.f32 0.0, %v712
    %v715 = vmul.f32 %v714, 1.442695
    %v716 = vpow.pop %v715
    %v717 = vadd.f32 %v716, 1.0
    %v718 = vrcp.pop %v717
    %v719 = vsel %vm168, %v713, %v718
    %v720 = vmul.f32 %v719, %v650
    %722 = vrot.lane.b32.xlu0 %v719, 64
    %v723 = vpop.permute.xlu0 %722
    %v725 = vmul.f32 %v719, %v723
    %727 = vrot.lane.b32.xlu0 %v725, 32
    %v728 = vpop.permute.xlu0 %727
    %v730 = vadd.f32 %v720, %v728
    %v731 = vtanh.pop %v730
    %733 = vrot.lane.b32.xlu0 %v731, 64
    %v734 = vpop.permute.xlu0 %733
    %v736 = vmul.f32 %v719, %v734
    %738 = vrot.lane.b32.xlu0 %v736, 32
    %v739 = vpop.permute.xlu0 %738
    %s741 = scalar_lea.vmem [#allocation3], 48
    %742 = vst.msk [vmem:[%s741] sm:$0xff] %vm185, %v739
    %v743 = vpack.c.bf16 %v736, %v736
    %s744 = scalar_lea.vmem [#allocation2], 56
    %v745 = vld [vmem:[%s744] sm:$0xff]
    %747 = vrot.lane.b32.xlu0 %v743, 32
    %v748 = vpop.permute.xlu0 %747
    %v750 = vsel %vm185, %v748, 0
    %752 = vmatprep.subr.bf16.mxu0 0
    %753 = vmatpush1.bf16.msra.mxu0 %v181
    %754 = vmatprep.subr.bf16.mxu0 0
    %755 = vmatpush1.bf16.msra.mxu0 %v182
    %756 = vmatprep.subr.bf16.mxu0 0
    %757 = vmatpush1.bf16.msra.mxu0 0
    %758 = vmatprep.subr.bf16.mxu0 0
    %759 = vmatpush1.bf16.msra.mxu0 0
    %760 = vmatprep.subr.bf16.mxu0 0
    %761 = vmatpush1.bf16.msra.mxu0 0
    %762 = vmatprep.subr.bf16.mxu0 0
    %763 = vmatpush1.bf16.msra.mxu0 0
    %764 = vmatprep.subr.bf16.mxu0 0
    %765 = vmatpush1.bf16.msra.mxu0 0
    %766 = vmatprep.subr.bf16.mxu0 0
    %767 = vmatpush1.bf16.msra.mxu0 0
    %768 = vmatprep.subr.bf16.mxu0 0
    %769 = vmatpush1.bf16.msra.mxu0 0
    %770 = vmatprep.subr.bf16.mxu0 0
    %771 = vmatpush1.bf16.msra.mxu0 0
    %772 = vmatprep.subr.bf16.mxu0 0
    %773 = vmatpush1.bf16.msra.mxu0 0
    %774 = vmatprep.subr.bf16.mxu0 0
    %775 = vmatpush1.bf16.msra.mxu0 0
    %776 = vmatprep.subr.bf16.mxu0 0
    %777 = vmatpush1.bf16.msra.mxu0 0
    %778 = vmatprep.subr.bf16.mxu0 0
    %779 = vmatpush1.bf16.msra.mxu0 0
    %780 = vmatprep.subr.bf16.mxu0 0
    %781 = vmatpush1.bf16.msra.mxu0 0
    %782 = vmatprep.subr.bf16.mxu0 0
    %783 = vmatpush1.bf16.msra.mxu0 0
    %784 = vmatprep.mubr.bf16.mxu0 0
    %785 = vmatmul.mubr.bf16.gmra.mrb[0].mxu0 %v750
    %v786 = vpop.f32.mrb[0].mxu0
    %v787 = vadd.f32 0.0, %v786
    %v788 = vpop.f32.mrb[0].mxu0
    %v789 = vpop.f32.mrb[0].mxu0
    %v790 = vpop.f32.mrb[0].mxu0
    %791 = vdwg.mxu0
    %v792 = vadd.f32 %v745, %v787
    %v793 = vtanh.pop %v792
    %v794 = vsub.f32 0.0, %v792
    %v795 = vmul.f32 %v794, 1.442695
    %v796 = vpow.pop %v795
    %v797 = vadd.f32 %v796, 1.0
    %v798 = vrcp.pop %v797
    %v799 = vsel %vm168, %v793, %v798
    %v800 = vmul.f32 %v799, %v730
    %802 = vrot.lane.b32.xlu0 %v799, 64
    %v803 = vpop.permute.xlu0 %802
    %v805 = vmul.f32 %v799, %v803
    %807 = vrot.lane.b32.xlu0 %v805, 32
    %v808 = vpop.permute.xlu0 %807
    %v810 = vadd.f32 %v800, %v808
    %v811 = vtanh.pop %v810
    %813 = vrot.lane.b32.xlu0 %v811, 64
    %v814 = vpop.permute.xlu0 %813
    %v816 = vmul.f32 %v799, %v814
    %818 = vrot.lane.b32.xlu0 %v816, 32
    %v819 = vpop.permute.xlu0 %818
    %s821 = scalar_lea.vmem [#allocation3], 56
    %822 = vst.msk [vmem:[%s821] sm:$0xff] %vm185, %v819
    %v823 = vld [vmem:[#allocation3] sm:$0xff]
    %v824 = vld [vmem:[#allocation3 + $0x8] sm:$0xff]
    %v825 = vld [vmem:[#allocation3 + $0x10] sm:$0xff]
    %v826 = vld [vmem:[#allocation3 + $0x18] sm:$0xff]
    %v827 = vld [vmem:[#allocation3 + $0x20] sm:$0xff]
    %v828 = vld [vmem:[#allocation3 + $0x28] sm:$0xff]
    %v829 = vld [vmem:[#allocation3 + $0x30] sm:$0xff]
    %v830 = vld [vmem:[#allocation3 + $0x38] sm:$0xff]
    %v831 = vpack.c.bf16 %v824, %v823
    %v832 = vpack.c.bf16 %v826, %v825
    %v833 = vpack.c.bf16 %v828, %v827
    %v834 = vpack.c.bf16 %v830, %v829
    %v835 = vld [vmem:[%s4] sm:$0xf]
    %v836 = vld [vmem:[%s4 + $0x4] sm:$0xf]
    %v837 = vld [vmem:[%s4 + $0x8] sm:$0xf]
    %v838 = vld [vmem:[%s4 + $0xc] sm:$0xf]
    %v839 = vld [vmem:[%s5] sm:$0x1]
    %v841 = vlaneseq
    %v842 = vshrl.u32 %v841, 7
    %v843 = vsub.s32 0, %v842
    %v844 = vrot.slane %v839, %v843
    %v850 = vunpack.c.l.b16 %v835
    %v851 = vunpack.c.l.b16 %v836
    %v852 = vunpack.c.l.b16 %v837
    %v853 = vunpack.c.l.b16 %v838
    %v854 = vpack.c.b16 %v851, %v850
    %v855 = vpack.c.b16 %v853, %v852
    %v859 = vsel %vm185, %v831, 0
    %v862 = vsel %vm185, %v832, 0
    %v865 = vsel %vm185, %v833, 0
    %v868 = vsel %vm185, %v834, 0
    %870 = vmatprep.subr.bf16.mxu0 0
    %871 = vmatpush1.bf16.msra.mxu0 %v854
    %872 = vmatprep.subr.bf16.mxu0 0
    %873 = vmatpush1.bf16.msra.mxu0 %v855
    %874 = vmatprep.subr.bf16.mxu0 0
    %875 = vmatpush1.bf16.msra.mxu0 0
    %876 = vmatprep.subr.bf16.mxu0 0
    %877 = vmatpush1.bf16.msra.mxu0 0
    %878 = vmatprep.subr.bf16.mxu0 0
    %879 = vmatpush1.bf16.msra.mxu0 0
    %880 = vmatprep.subr.bf16.mxu0 0
    %881 = vmatpush1.bf16.msra.mxu0 0
    %882 = vmatprep.subr.bf16.mxu0 0
    %883 = vmatpush1.bf16.msra.mxu0 0
    %884 = vmatprep.subr.bf16.mxu0 0
    %885 = vmatpush1.bf16.msra.mxu0 0
    %886 = vmatprep.subr.bf16.mxu0 0
    %887 = vmatpush1.bf16.msra.mxu0 0
    %888 = vmatprep.subr.bf16.mxu0 0
    %889 = vmatpush1.bf16.msra.mxu0 0
    %890 = vmatprep.subr.bf16.mxu0 0
    %891 = vmatpush1.bf16.msra.mxu0 0
    %892 = vmatprep.subr.bf16.mxu0 0
    %893 = vmatpush1.bf16.msra.mxu0 0
    %894 = vmatprep.subr.bf16.mxu0 0
    %895 = vmatpush1.bf16.msra.mxu0 0
    %896 = vmatprep.subr.bf16.mxu0 0
    %897 = vmatpush1.bf16.msra.mxu0 0
    %898 = vmatprep.subr.bf16.mxu0 0
    %899 = vmatpush1.bf16.msra.mxu0 0
    %900 = vmatprep.subr.bf16.mxu0 0
    %901 = vmatpush1.bf16.msra.mxu0 0
    %902 = vmatprep.mubr.bf16.mxu0 0
    %903 = vmatmul.mubr.bf16.gmra.mrb[0].mxu0 %v859
    %v904 = vpop.f32.mrb[0].mxu0
    %v905 = vadd.f32 %v844, %v904
    %v906 = vpop.f32.mrb[0].mxu0
    %v907 = vpop.f32.mrb[0].mxu0
    %v908 = vadd.f32 %v844, %v907
    %v909 = vpop.f32.mrb[0].mxu0
    %910 = vmatprep.mubr.bf16.mxu0 0
    %911 = vmatmul.mubr.bf16.gmra.mrb[0].mxu0 %v862
    %v912 = vpop.f32.mrb[0].mxu0
    %v913 = vadd.f32 %v844, %v912
    %v914 = vpop.f32.mrb[0].mxu0
    %v915 = vpop.f32.mrb[0].mxu0
    %v916 = vadd.f32 %v844, %v915
    %v917 = vpop.f32.mrb[0].mxu0
    %918 = vmatprep.mubr.bf16.mxu0 0
    %919 = vmatmul.mubr.bf16.gmra.mrb[0].mxu0 %v865
    %v920 = vpop.f32.mrb[0].mxu0
    %v921 = vadd.f32 %v844, %v920
    %v922 = vpop.f32.mrb[0].mxu0
    %v923 = vpop.f32.mrb[0].mxu0
    %v924 = vadd.f32 %v844, %v923
    %v925 = vpop.f32.mrb[0].mxu0
    %926 = vmatprep.mubr.bf16.mxu0 0
    %927 = vmatmul.mubr.bf16.gmra.mrb[0].mxu0 %v868
    %v928 = vpop.f32.mrb[0].mxu0
    %v929 = vadd.f32 %v844, %v928
    %v930 = vpop.f32.mrb[0].mxu0
    %v931 = vpop.f32.mrb[0].mxu0
    %v932 = vadd.f32 %v844, %v931
    %v933 = vpop.f32.mrb[0].mxu0
    %934 = vdwg.mxu0
    %935 = vst [vmem:[#allocation4] sm:$0xff] %v905
    %936 = vst [vmem:[#allocation4 + $0x8] sm:$0xff] %v908
    %937 = vst [vmem:[#allocation4 + $0x10] sm:$0xff] %v913
    %938 = vst [vmem:[#allocation4 + $0x18] sm:$0xff] %v916
    %939 = vst [vmem:[#allocation4 + $0x20] sm:$0xff] %v921
    %940 = vst [vmem:[#allocation4 + $0x28] sm:$0xff] %v924
    %941 = vst [vmem:[#allocation4 + $0x30] sm:$0xff] %v929
    %942 = vst [vmem:[#allocation4 + $0x38] sm:$0xff] %v932
    // Predicated region
    $region34: #{tpu_custom_call.1} parent=1 // pred_check
      _
    $region35: #{tpu_custom_call.1} parent=1 // pred_check_branch
      %944 = sbr.rel (0) target = $region37
    $region36: #{tpu_custom_call.1} parent=1 // pred_region
      %s946 = ssub.s32 1024, 1024
      %947 = vsyncadd [#allocation5], %s946
      %s948 = sshll.u32 [#allocation4], 4
      %s949 = int_to_ptr.vmem [resolvable:$true] %s948
      %954 = dma.vmem_to_hbm [thread:$0]  %s949, 1024, %s8, [#allocation5], 128, 128, 8
    $region37: #{tpu_custom_call.1} parent=1 // pred_fallthru
      _
    // Predicated region
    $region38: #{tpu_custom_call.1} parent=1 // pred_check
      _
    $region39: #{tpu_custom_call.1} parent=1 // pred_check_branch
      %956 = sbr.rel (0) target = $region41
    $region40: #{tpu_custom_call.1} parent=1 // pred_region
      %957 = dma.done [#allocation5], 1024
    $region41: #{tpu_custom_call.1} parent=1 // pred_fallthru
      _
    %958 = vsyncpa [#allocation5], 1

</llo_original>
